<compile_context>
chip_gen: v7x
topology: tpu7x:2x2x1
jax: 0.10.0
libtpu: 0.0.40
codegen_flags: <defaults>
</compile_context>

<pallas_src>
import numpy as np
import jax
import jax.numpy as jnp
from jax.experimental import pallas as pl
from jax.experimental.pallas import tpu as pltpu

N_TOKENS = 77   # CLIP context length
N_DESC = 2      # number of (prompt, topo) descriptions per classname
N_SET = 2       # cfg.TRAINER.HPT_PLUS.N_SET   (only affects prompt prefix length)
N_TPRO = 4      # cfg.TRAINER.HPT_PLUS.N_TPRO  (only affects prompt prefix length)

CLASSNAMES = ["golden_retriever", "sports_car", "mountain_bike"]

_LANES = 128                                   # lane-dense last dim
_ROW_PAD = ((N_TOKENS + 7) // 8) * 8           # 77 -> 80 sublanes
_BLOCK_BYTES_BUDGET = 2 * 1024 * 1024          # ~2 MiB per operand per block


# ----------------------------------------------------------------------------
# Pallas kernel: elementwise add over lane-dense padded tiles, bf16 in/out.
# ----------------------------------------------------------------------------
def _add_attn_kernel(intra_ref, cross_ref, out_ref):
    # bf16 + bf16 -> bf16 (exact for 0/1/2).  v5e upconverts internally.
    out_ref[...] = (intra_ref[...] + cross_ref[...]).astype(out_ref.dtype)


def _fused_add(intra_p, cross_p):
    """intra/cross: [N, 80, 128] bf16 (pre-packed, lane-dense) -> [N, 80, 128] bf16.

    Single fused pallas_call over all classes/descriptions.  The grid is a
    1-D tiling of the leading axis sized so each block stays ~2 MiB per
    operand (fits every generation's VMEM incl. v7x's 64 MiB, leaves room for
    double buffering); at the current tiny size this is one grid step.
    """
    N, R, L = intra_p.shape
    item_bytes = R * L * intra_p.dtype.itemsize
    block_n = int(max(1, min(N, _BLOCK_BYTES_BUDGET // item_bytes)))
    grid = (pl.cdiv(N, block_n),)

    spec = pl.BlockSpec((block_n, R, L), lambda i: (i, 0, 0),
                        memory_space=pltpu.MemorySpace.VMEM)
    return pl.pallas_call(
        _add_attn_kernel,
        out_shape=jax.ShapeDtypeStruct((N, R, L), jnp.bfloat16),
        grid=grid,
        in_specs=[spec, spec],
        out_specs=spec,
        compiler_params=pltpu.CompilerParams(
            dimension_semantics=("parallel",)),  # shards across v7x's 2 TCs
    )(intra_p, cross_p)


# ----------------------------------------------------------------------------
# Build-time packing: [D, 77, 77] f32 per class -> one [C*D, 80, 128] bf16 slab.
# Done ONCE at init; no packing on the call path.
# ----------------------------------------------------------------------------
def _pack_attns(attns_dict, classnames):
    mats = np.stack([np.asarray(attns_dict[c], dtype=np.float32)
                     for c in classnames], axis=0)         # [C, D, T, T]
    C, D, T, _ = mats.shape
    assert T <= _LANES, "token length must fit one 128-lane tile"
    padded = np.zeros((C, D, _ROW_PAD, _LANES), dtype=np.float32)
    padded[:, :, :T, :T] = mats
    # 0/1 are exact in bf16 -> no precision loss.
    return jnp.asarray(padded.reshape(C * D, _ROW_PAD, _LANES),
                       dtype=jnp.bfloat16), C, D, T


class TopoPromptLearner:
    """JAX/Pallas mirror of the PyTorch TopoPromptLearner.

    The attention matrices are init-time constants, so the fused add kernel
    runs exactly once here and forward() returns the cached result (the
    review's 'biggest win').
    """

    def __init__(self, classnames, attns_intra, attns_cross,
                 out_dtype=jnp.bfloat16):
        self.classnames = classnames
        intra_p, C, D, T = _pack_attns(attns_intra, classnames)
        cross_p, _, _, _ = _pack_attns(attns_cross, classnames)

        slab = _fused_add(intra_p, cross_p)                 # [C*D, 80, 128] bf16
        # Cheap static slice of the padded tiles (no non-128-aligned flat
        # reshape); runs once at build time because the result is cached.
        out = slab.reshape(C, D, _ROW_PAD, _LANES)[:, :, :T, :T]
        out = out.astype(out_dtype)
        self._cached = {c.replace("_", " "): out[i]
                        for i, c in enumerate(classnames)}

    def forward(self):
        return self._cached

    __call__ = forward


# ----------------------------------------------------------------------------
# Host-side (glue) construction of the binary attention matrices, mimicking
# create_attention_matrix() with deterministic synthetic entity spans.
# ----------------------------------------------------------------------------
def _create_attention_matrix(n_tokens, relationships):
    attn = np.zeros((n_tokens, n_tokens), dtype=np.float32)
    for e in relationships:
        e0, e1 = list(e[0]), list(e[1])
        if not e0 or not e1:
            continue
        attn[np.ix_(e0, e1)] = 1.0
        attn[np.ix_(e1, e0)] = 1.0
    return attn


def build_synthetic_attns(classnames, n_desc, n_tokens, seed=0):
    """Deterministic intra/cross attention matrices per classname (f32 numpy)."""
    rng = np.random.RandomState(seed)
    prefix_len = 1 + N_TPRO + N_SET  # [SOS] + 'X' * (n_tpro + n_set)
    attns_intra, attns_cross = {}, {}
    for classname in classnames:
        intra_list, cross_list = [], []
        for _ in range(n_desc):
            len1 = int(rng.randint(1, 4))
            len2 = int(rng.randint(1, 4))
            start1 = prefix_len + int(rng.randint(0, 8))
            start2 = start1 + len1 + int(rng.randint(1, 8))
            e1 = list(range(start1, min(start1 + len1, n_tokens)))
            e2 = list(range(start2, min(start2 + len2, n_tokens)))
            intra_rel = [[e1, e1], [e2, e2]]
            cross_rel = [[e1, e2]]
            intra_list.append(_create_attention_matrix(n_tokens, intra_rel))
            cross_list.append(_create_attention_matrix(n_tokens, cross_rel))
        attns_intra[classname] = np.stack(intra_list, axis=0)   # [D, T, T] f32
        attns_cross[classname] = np.stack(cross_list, axis=0)
    return attns_intra, attns_cross


def reference_forward(attns_intra, attns_cross, classnames):
    out = {}
    for classname in classnames:
        key = classname.replace("_", " ")
        out[key] = (jnp.asarray(attns_intra[classname], dtype=jnp.float32)
                    + jnp.asarray(attns_cross[classname], dtype=jnp.float32))
    return out


if __name__ == "__main__":
    # (jax.random.PRNGKey(0) kept for determinism convention; span synthesis
    # itself uses a seeded numpy RNG since it is host-side integer glue.)
    _ = jax.random.PRNGKey(0)
    attns_intra, attns_cross = build_synthetic_attns(
        CLASSNAMES, N_DESC, N_TOKENS, seed=0)

    learner = TopoPromptLearner(CLASSNAMES, attns_intra, attns_cross)
    result = learner()                       # cached: kernel already ran once
    for v in result.values():
        jax.block_until_ready(v)

    # correctness check against pure-JAX reference (values 0/1/2 are exact)
    ref = reference_forward(attns_intra, attns_cross, CLASSNAMES)
    for k in result:
        np.testing.assert_allclose(
            np.asarray(result[k], dtype=np.float32), np.asarray(ref[k]),
            rtol=0, atol=0)
        assert result[k].shape == (N_DESC, N_TOKENS, N_TOKENS)
        assert result[k].dtype == jnp.bfloat16

    # calling forward() again must not relaunch anything (cached constants)
    result2 = learner.forward()
    assert all(result2[k] is result[k] for k in result)

    print("KERNEL_OK")
</pallas_src>

<mosaic_0001>
module attributes {stable_mosaic.version = 11 : i64} {
  func.func @_add_attn_kernel(%arg0: i32, %arg1: memref<6x80x128xbf16, #tpu.memory_space<vmem>>, %arg2: memref<6x80x128xbf16, #tpu.memory_space<vmem>>, %arg3: memref<6x80x128xbf16, #tpu.memory_space<vmem>>) attributes {dimension_semantics = [#tpu.dimension_semantics<parallel>], iteration_bounds = array<i64: 1>, scalar_prefetch = 0 : i64, scratch_operands = 0 : i64, tpu.core_type = #tpu.core_type<tc>, window_params = [{transform_indices = @transform_0, window_bounds = array<i64: 6, 80, 128>}, {transform_indices = @transform_1, window_bounds = array<i64: 6, 80, 128>}, {transform_indices = @transform_2, window_bounds = array<i64: 6, 80, 128>}]} {
    %c0 = arith.constant 0 : index
    %c0_0 = arith.constant 0 : index
    %c0_1 = arith.constant 0 : index
    %0 = vector.load %arg1[%c0, %c0_0, %c0_1] : memref<6x80x128xbf16, #tpu.memory_space<vmem>>, vector<6x80x128xbf16>
    %c0_2 = arith.constant 0 : index
    %c0_3 = arith.constant 0 : index
    %c0_4 = arith.constant 0 : index
    %1 = vector.load %arg2[%c0_2, %c0_3, %c0_4] : memref<6x80x128xbf16, #tpu.memory_space<vmem>>, vector<6x80x128xbf16>
    %2 = arith.addf %0, %1 : vector<6x80x128xbf16>
    %c0_5 = arith.constant 0 : index
    %c0_6 = arith.constant 0 : index
    %c0_7 = arith.constant 0 : index
    %3 = vector.load %arg3[%c0_5, %c0_6, %c0_7] : memref<6x80x128xbf16, #tpu.memory_space<vmem>>, vector<6x80x128xbf16>
    tpu.vector_store %arg3[%c0_5, %c0_6, %c0_7], %2 {strides = array<i32>} : memref<6x80x128xbf16, #tpu.memory_space<vmem>>, vector<6x80x128xbf16>,
    return
  }
  func.func @transform_0(%arg0: i32) -> (i32, i32, i32) {
    %c0_i32 = arith.constant 0 : i32
    %c0_i32_0 = arith.constant 0 : i32
    %c0_i32_1 = arith.constant 0 : i32
    return %arg0, %c0_i32, %c0_i32_0 : i32, i32, i32
  }
  func.func @transform_1(%arg0: i32) -> (i32, i32, i32) {
    %c0_i32 = arith.constant 0 : i32
    %c0_i32_0 = arith.constant 0 : i32
    %c0_i32_1 = arith.constant 0 : i32
    return %arg0, %c0_i32, %c0_i32_0 : i32, i32, i32
  }
  func.func @transform_2(%arg0: i32) -> (i32, i32, i32) {
    %c0_i32 = arith.constant 0 : i32
    %c0_i32_0 = arith.constant 0 : i32
    %c0_i32_1 = arith.constant 0 : i32
    return %arg0, %c0_i32, %c0_i32_0 : i32, i32, i32
  }
}

</mosaic_0001>

<llo_original>
// kernel: tpu_custom_call.1
$region0: #{tpu_custom_call.1}
  #allocation0 [shape = 'u32[]', space=smem, size = 0x4, offset = 0x4, fixed_abs, tag = 'smem constant byte address 0x4 - core index']
  #allocation1 [shape = 'u32[144,128]{1,0:T(1,128)}', space=vmem, size = 0x12000, scoped, tag = 'internal scratch']
  %s0 = inlined_call_operand.hbm [shape: bf16[6,80,128], index: 0, kind: input, shape index: {}]
  %s1 = inlined_call_operand.hbm [shape: bf16[6,80,128], index: 1, kind: input, shape index: {}]
  %s2 = inlined_call_operand.hbm [shape: bf16[6,80,128], index: 2, kind: output, shape index: {}]
  %s3 = sld [smem:[#allocation0]]
  $region26: #{tpu_custom_call.1} parent=0
    _
  %s5 = ssub.s32 1, %s3
  %s6 = scalar_select 0, %s5, %s3
  $region1: #{tpu_custom_call.1} parent=0
    #allocation2 [shape = 'u8[122880]{0}', space=vmem, size = 0x1e000, scoped, tag = 'input window, operand 0, single buffered']
    #allocation3 [shape = 's32[1]{0}', space=sflag, size = 0x4, scoped, tag = 'scoped memory for tpu_custom_call.1']
    #allocation4 [shape = 's32[1]{0}', space=sflag, size = 0x4, scoped, tag = 'scoped memory for tpu_custom_call.1']
    #allocation5 [shape = 'u8[122880]{0}', space=vmem, size = 0x1e000, scoped, tag = 'input window, operand 1, single buffered']
    #allocation6 [shape = 's32[1]{0}', space=sflag, size = 0x4, scoped, tag = 'scoped memory for tpu_custom_call.1']
    #allocation7 [shape = 'u8[122880]{0}', space=vmem, size = 0x1e000, scoped, tag = 'output window, operand 0, single buffered']
    %7 = vsyncpa [#allocation3], 0
    %8 = vsyncpa [#allocation6], 0
    %9 = vsyncpa [#allocation4], 0
    // Predicated region
    $region2: #{tpu_custom_call.1} parent=1 // pred_check
      _
    $region3: #{tpu_custom_call.1} parent=1 // pred_check_branch
      %11 = sbr.rel (0) target = $region5
    $region4: #{tpu_custom_call.1} parent=1 // pred_region
      %s13 = ssub.s32 3840, 3840
      %14 = vsyncadd [#allocation3], %s13
      %s15 = sshll.u32 [#allocation2], 4
      %s16 = int_to_ptr.vmem [resolvable:$true] %s15
      %21 = dma.hbm_to_vmem [thread:$0]  %s0, 3840, %s16, [#allocation3], 64, 64, 4
    $region5: #{tpu_custom_call.1} parent=1 // pred_fallthru
      _
    // Predicated region
    $region6: #{tpu_custom_call.1} parent=1 // pred_check
      _
    $region7: #{tpu_custom_call.1} parent=1 // pred_check_branch
      %23 = sbr.rel (0) target = $region9
    $region8: #{tpu_custom_call.1} parent=1 // pred_region
      %s25 = ssub.s32 3840, 3840
      %26 = vsyncadd [#allocation6], %s25
      %s27 = sshll.u32 [#allocation5], 4
      %s28 = int_to_ptr.vmem [resolvable:$true] %s27
      %33 = dma.hbm_to_vmem [thread:$0]  %s1, 3840, %s28, [#allocation6], 64, 64, 4
    $region9: #{tpu_custom_call.1} parent=1 // pred_fallthru
      _
    // Predicated region
    $region10: #{tpu_custom_call.1} parent=1 // pred_check
      _
    $region11: #{tpu_custom_call.1} parent=1 // pred_check_branch
      %35 = sbr.rel (0) target = $region13
    $region12: #{tpu_custom_call.1} parent=1 // pred_region
      %36 = dma.done [#allocation3], 3840
    $region13: #{tpu_custom_call.1} parent=1 // pred_fallthru
      _
    // Predicated region
    $region14: #{tpu_custom_call.1} parent=1 // pred_check
      _
    $region15: #{tpu_custom_call.1} parent=1 // pred_check_branch
      %38 = sbr.rel (0) target = $region17
    $region16: #{tpu_custom_call.1} parent=1 // pred_region
      %39 = dma.done [#allocation6], 3840
    $region17: #{tpu_custom_call.1} parent=1 // pred_fallthru
      _
    %v40 = vld [vmem:[#allocation2] sm:$0xf]
    %v41 = vld [vmem:[#allocation2 + $0x4] sm:$0xf]
    %v42 = vld [vmem:[#allocation2 + $0x8] sm:$0xf]
    %v43 = vld [vmem:[#allocation2 + $0xc] sm:$0xf]
    %v44 = vld [vmem:[#allocation2 + $0x10] sm:$0xf]
    %v45 = vld [vmem:[#allocation2 + $0x14] sm:$0xf]
    %v46 = vld [vmem:[#allocation2 + $0x18] sm:$0xf]
    %v47 = vld [vmem:[#allocation2 + $0x1c] sm:$0xf]
    %v48 = vld [vmem:[#allocation2 + $0x20] sm:$0xf]
    %v49 = vld [vmem:[#allocation2 + $0x24] sm:$0xf]
    %v50 = vld [vmem:[#allocation2 + $0x28] sm:$0xf]
    %v51 = vld [vmem:[#allocation2 + $0x2c] sm:$0xf]
    %v52 = vld [vmem:[#allocation2 + $0x30] sm:$0xf]
    %v53 = vld [vmem:[#allocation2 + $0x34] sm:$0xf]
    %v54 = vld [vmem:[#allocation2 + $0x38] sm:$0xf]
    %v55 = vld [vmem:[#allocation2 + $0x3c] sm:$0xf]
    %v56 = vld [vmem:[#allocation2 + $0x40] sm:$0xf]
    %v57 = vld [vmem:[#allocation2 + $0x44] sm:$0xf]
    %v58 = vld [vmem:[#allocation2 + $0x48] sm:$0xf]
    %v59 = vld [vmem:[#allocation2 + $0x4c] sm:$0xf]
    %v60 = vld [vmem:[#allocation2 + $0x50] sm:$0xf]
    %v61 = vld [vmem:[#allocation2 + $0x54] sm:$0xf]
    %v62 = vld [vmem:[#allocation2 + $0x58] sm:$0xf]
    %v63 = vld [vmem:[#allocation2 + $0x5c] sm:$0xf]
    %v64 = vld [vmem:[#allocation2 + $0x60] sm:$0xf]
    %v65 = vld [vmem:[#allocation2 + $0x64] sm:$0xf]
    %v66 = vld [vmem:[#allocation2 + $0x68] sm:$0xf]
    %v67 = vld [vmem:[#allocation2 + $0x6c] sm:$0xf]
    %v68 = vld [vmem:[#allocation2 + $0x70] sm:$0xf]
    %v69 = vld [vmem:[#allocation2 + $0x74] sm:$0xf]
    %v70 = vld [vmem:[#allocation2 + $0x78] sm:$0xf]
    %v71 = vld [vmem:[#allocation2 + $0x7c] sm:$0xf]
    %v72 = vld [vmem:[#allocation2 + $0x80] sm:$0xf]
    %v73 = vld [vmem:[#allocation2 + $0x84] sm:$0xf]
    %v74 = vld [vmem:[#allocation2 + $0x88] sm:$0xf]
    %v75 = vld [vmem:[#allocation2 + $0x8c] sm:$0xf]
    %v76 = vld [vmem:[#allocation2 + $0x90] sm:$0xf]
    %v77 = vld [vmem:[#allocation2 + $0x94] sm:$0xf]
    %v78 = vld [vmem:[#allocation2 + $0x98] sm:$0xf]
    %v79 = vld [vmem:[#allocation2 + $0x9c] sm:$0xf]
    %v80 = vld [vmem:[#allocation2 + $0xa0] sm:$0xf]
    %v81 = vld [vmem:[#allocation2 + $0xa4] sm:$0xf]
    %v82 = vld [vmem:[#allocation2 + $0xa8] sm:$0xf]
    %v83 = vld [vmem:[#allocation2 + $0xac] sm:$0xf]
    %v84 = vld [vmem:[#allocation2 + $0xb0] sm:$0xf]
    %v85 = vld [vmem:[#allocation2 + $0xb4] sm:$0xf]
    %v86 = vld [vmem:[#allocation2 + $0xb8] sm:$0xf]
    %v87 = vld [vmem:[#allocation2 + $0xbc] sm:$0xf]
    %v88 = vld [vmem:[#allocation2 + $0xc0] sm:$0xf]
    %v89 = vld [vmem:[#allocation2 + $0xc4] sm:$0xf]
    %v90 = vld [vmem:[#allocation2 + $0xc8] sm:$0xf]
    %v91 = vld [vmem:[#allocation2 + $0xcc] sm:$0xf]
    %v92 = vld [vmem:[#allocation2 + $0xd0] sm:$0xf]
    %v93 = vld [vmem:[#allocation2 + $0xd4] sm:$0xf]
    %v94 = vld [vmem:[#allocation2 + $0xd8] sm:$0xf]
    %v95 = vld [vmem:[#allocation2 + $0xdc] sm:$0xf]
    %v96 = vld [vmem:[#allocation2 + $0xe0] sm:$0xf]
    %v97 = vld [vmem:[#allocation2 + $0xe4] sm:$0xf]
    %v98 = vld [vmem:[#allocation2 + $0xe8] sm:$0xf]
    %v99 = vld [vmem:[#allocation2 + $0xec] sm:$0xf]
    %v100 = vld [vmem:[#allocation5] sm:$0xf]
    %v101 = vld [vmem:[#allocation5 + $0x4] sm:$0xf]
    %v102 = vld [vmem:[#allocation5 + $0x8] sm:$0xf]
    %v103 = vld [vmem:[#allocation5 + $0xc] sm:$0xf]
    %v104 = vld [vmem:[#allocation5 + $0x10] sm:$0xf]
    %v105 = vld [vmem:[#allocation5 + $0x14] sm:$0xf]
    %v106 = vld [vmem:[#allocation5 + $0x18] sm:$0xf]
    %v107 = vld [vmem:[#allocation5 + $0x1c] sm:$0xf]
    %v108 = vld [vmem:[#allocation5 + $0x20] sm:$0xf]
    %v109 = vld [vmem:[#allocation5 + $0x24] sm:$0xf]
    %v110 = vld [vmem:[#allocation5 + $0x28] sm:$0xf]
    %v111 = vld [vmem:[#allocation5 + $0x2c] sm:$0xf]
    %v112 = vld [vmem:[#allocation5 + $0x30] sm:$0xf]
    %v113 = vld [vmem:[#allocation5 + $0x34] sm:$0xf]
    %v114 = vld [vmem:[#allocation5 + $0x38] sm:$0xf]
    %v115 = vld [vmem:[#allocation5 + $0x3c] sm:$0xf]
    %v116 = vld [vmem:[#allocation5 + $0x40] sm:$0xf]
    %v117 = vld [vmem:[#allocation5 + $0x44] sm:$0xf]
    %v118 = vld [vmem:[#allocation5 + $0x48] sm:$0xf]
    %v119 = vld [vmem:[#allocation5 + $0x4c] sm:$0xf]
    %v120 = vld [vmem:[#allocation5 + $0x50] sm:$0xf]
    %v121 = vld [vmem:[#allocation5 + $0x54] sm:$0xf]
    %v122 = vld [vmem:[#allocation5 + $0x58] sm:$0xf]
    %v123 = vld [vmem:[#allocation5 + $0x5c] sm:$0xf]
    %v124 = vld [vmem:[#allocation5 + $0x60] sm:$0xf]
    %v125 = vld [vmem:[#allocation5 + $0x64] sm:$0xf]
    %v126 = vld [vmem:[#allocation5 + $0x68] sm:$0xf]
    %v127 = vld [vmem:[#allocation5 + $0x6c] sm:$0xf]
    %v128 = vld [vmem:[#allocation5 + $0x70] sm:$0xf]
    %v129 = vld [vmem:[#allocation5 + $0x74] sm:$0xf]
    %v130 = vld [vmem:[#allocation5 + $0x78] sm:$0xf]
    %v131 = vld [vmem:[#allocation5 + $0x7c] sm:$0xf]
    %v132 = vld [vmem:[#allocation5 + $0x80] sm:$0xf]
    %v133 = vld [vmem:[#allocation5 + $0x84] sm:$0xf]
    %v134 = vld [vmem:[#allocation5 + $0x88] sm:$0xf]
    %v135 = vld [vmem:[#allocation5 + $0x8c] sm:$0xf]
    %v136 = vld [vmem:[#allocation5 + $0x90] sm:$0xf]
    %v137 = vld [vmem:[#allocation5 + $0x94] sm:$0xf]
    %v138 = vld [vmem:[#allocation5 + $0x98] sm:$0xf]
    %v139 = vld [vmem:[#allocation5 + $0x9c] sm:$0xf]
    %v140 = vld [vmem:[#allocation5 + $0xa0] sm:$0xf]
    %v141 = vld [vmem:[#allocation5 + $0xa4] sm:$0xf]
    %v142 = vld [vmem:[#allocation5 + $0xa8] sm:$0xf]
    %v143 = vld [vmem:[#allocation5 + $0xac] sm:$0xf]
    %v144 = vld [vmem:[#allocation5 + $0xb0] sm:$0xf]
    %v145 = vld [vmem:[#allocation5 + $0xb4] sm:$0xf]
    %v146 = vld [vmem:[#allocation5 + $0xb8] sm:$0xf]
    %v147 = vld [vmem:[#allocation5 + $0xbc] sm:$0xf]
    %v148 = vld [vmem:[#allocation5 + $0xc0] sm:$0xf]
    %v149 = vld [vmem:[#allocation5 + $0xc4] sm:$0xf]
    %v150 = vld [vmem:[#allocation5 + $0xc8] sm:$0xf]
    %v151 = vld [vmem:[#allocation5 + $0xcc] sm:$0xf]
    %v152 = vld [vmem:[#allocation5 + $0xd0] sm:$0xf]
    %v153 = vld [vmem:[#allocation5 + $0xd4] sm:$0xf]
    %v154 = vld [vmem:[#allocation5 + $0xd8] sm:$0xf]
    %v155 = vld [vmem:[#allocation5 + $0xdc] sm:$0xf]
    %v156 = vld [vmem:[#allocation5 + $0xe0] sm:$0xf]
    %v157 = vld [vmem:[#allocation5 + $0xe4] sm:$0xf]
    %v158 = vld [vmem:[#allocation5 + $0xe8] sm:$0xf]
    %v159 = vld [vmem:[#allocation5 + $0xec] sm:$0xf]
    %v160 = vadd.bf16 %v40, %v100
    %v161 = vadd.bf16 %v41, %v101
    %v162 = vadd.bf16 %v42, %v102
    %v163 = vadd.bf16 %v43, %v103
    %v164 = vadd.bf16 %v44, %v104
    %v165 = vadd.bf16 %v45, %v105
    %v166 = vadd.bf16 %v46, %v106
    %v167 = vadd.bf16 %v47, %v107
    %v168 = vadd.bf16 %v48, %v108
    %v169 = vadd.bf16 %v49, %v109
    %v170 = vadd.bf16 %v50, %v110
    %v171 = vadd.bf16 %v51, %v111
    %v172 = vadd.bf16 %v52, %v112
    %v173 = vadd.bf16 %v53, %v113
    %v174 = vadd.bf16 %v54, %v114
    %v175 = vadd.bf16 %v55, %v115
    %v176 = vadd.bf16 %v56, %v116
    %v177 = vadd.bf16 %v57, %v117
    %v178 = vadd.bf16 %v58, %v118
    %v179 = vadd.bf16 %v59, %v119
    %v180 = vadd.bf16 %v60, %v120
    %v181 = vadd.bf16 %v61, %v121
    %v182 = vadd.bf16 %v62, %v122
    %v183 = vadd.bf16 %v63, %v123
    %v184 = vadd.bf16 %v64, %v124
    %v185 = vadd.bf16 %v65, %v125
    %v186 = vadd.bf16 %v66, %v126
    %v187 = vadd.bf16 %v67, %v127
    %v188 = vadd.bf16 %v68, %v128
    %v189 = vadd.bf16 %v69, %v129
    %v190 = vadd.bf16 %v70, %v130
    %v191 = vadd.bf16 %v71, %v131
    %v192 = vadd.bf16 %v72, %v132
    %v193 = vadd.bf16 %v73, %v133
    %v194 = vadd.bf16 %v74, %v134
    %v195 = vadd.bf16 %v75, %v135
    %v196 = vadd.bf16 %v76, %v136
    %v197 = vadd.bf16 %v77, %v137
    %v198 = vadd.bf16 %v78, %v138
    %v199 = vadd.bf16 %v79, %v139
    %v200 = vadd.bf16 %v80, %v140
    %v201 = vadd.bf16 %v81, %v141
    %v202 = vadd.bf16 %v82, %v142
    %v203 = vadd.bf16 %v83, %v143
    %v204 = vadd.bf16 %v84, %v144
    %v205 = vadd.bf16 %v85, %v145
    %v206 = vadd.bf16 %v86, %v146
    %v207 = vadd.bf16 %v87, %v147
    %v208 = vadd.bf16 %v88, %v148
    %v209 = vadd.bf16 %v89, %v149
    %v210 = vadd.bf16 %v90, %v150
    %v211 = vadd.bf16 %v91, %v151
    %v212 = vadd.bf16 %v92, %v152
    %v213 = vadd.bf16 %v93, %v153
    %v214 = vadd.bf16 %v94, %v154
    %v215 = vadd.bf16 %v95, %v155
    %v216 = vadd.bf16 %v96, %v156
    %v217 = vadd.bf16 %v97, %v157
    %v218 = vadd.bf16 %v98, %v158
    %v219 = vadd.bf16 %v99, %v159
    %220 = vst [vmem:[#allocation7] sm:$0xf] %v160
    %221 = vst [vmem:[#allocation7 + $0x4] sm:$0xf] %v161
    %222 = vst [vmem:[#allocation7 + $0x8] sm:$0xf] %v162
    %223 = vst [vmem:[#allocation7 + $0xc] sm:$0xf] %v163
    %224 = vst [vmem:[#allocation7 + $0x10] sm:$0xf] %v164
    %225 = vst [vmem:[#allocation7 + $0x14] sm:$0xf] %v165
    %226 = vst [vmem:[#allocation7 + $0x18] sm:$0xf] %v166
    %227 = vst [vmem:[#allocation7 + $0x1c] sm:$0xf] %v167
    %228 = vst [vmem:[#allocation7 + $0x20] sm:$0xf] %v168
    %229 = vst [vmem:[#allocation7 + $0x24] sm:$0xf] %v169
    %230 = vst [vmem:[#allocation7 + $0x28] sm:$0xf] %v170
    %231 = vst [vmem:[#allocation7 + $0x2c] sm:$0xf] %v171
    %232 = vst [vmem:[#allocation7 + $0x30] sm:$0xf] %v172
    %233 = vst [vmem:[#allocation7 + $0x34] sm:$0xf] %v173
    %234 = vst [vmem:[#allocation7 + $0x38] sm:$0xf] %v174
    %235 = vst [vmem:[#allocation7 + $0x3c] sm:$0xf] %v175
    %236 = vst [vmem:[#allocation7 + $0x40] sm:$0xf] %v176
    %237 = vst [vmem:[#allocation7 + $0x44] sm:$0xf] %v177
    %238 = vst [vmem:[#allocation7 + $0x48] sm:$0xf] %v178
    %239 = vst [vmem:[#allocation7 + $0x4c] sm:$0xf] %v179
    %240 = vst [vmem:[#allocation7 + $0x50] sm:$0xf] %v180
    %241 = vst [vmem:[#allocation7 + $0x54] sm:$0xf] %v181
    %242 = vst [vmem:[#allocation7 + $0x58] sm:$0xf] %v182
    %243 = vst [vmem:[#allocation7 + $0x5c] sm:$0xf] %v183
    %244 = vst [vmem:[#allocation7 + $0x60] sm:$0xf] %v184
    %245 = vst [vmem:[#allocation7 + $0x64] sm:$0xf] %v185
    %246 = vst [vmem:[#allocation7 + $0x68] sm:$0xf] %v186
    %247 = vst [vmem:[#allocation7 + $0x6c] sm:$0xf] %v187
    %248 = vst [vmem:[#allocation7 + $0x70] sm:$0xf] %v188
    %249 = vst [vmem:[#allocation7 + $0x74] sm:$0xf] %v189
    %250 = vst [vmem:[#allocation7 + $0x78] sm:$0xf] %v190
    %251 = vst [vmem:[#allocation7 + $0x7c] sm:$0xf] %v191
    %252 = vst [vmem:[#allocation7 + $0x80] sm:$0xf] %v192
    %253 = vst [vmem:[#allocation7 + $0x84] sm:$0xf] %v193
    %254 = vst [vmem:[#allocation7 + $0x88] sm:$0xf] %v194
    %255 = vst [vmem:[#allocation7 + $0x8c] sm:$0xf] %v195
    %256 = vst [vmem:[#allocation7 + $0x90] sm:$0xf] %v196
    %257 = vst [vmem:[#allocation7 + $0x94] sm:$0xf] %v197
    %258 = vst [vmem:[#allocation7 + $0x98] sm:$0xf] %v198
    %259 = vst [vmem:[#allocation7 + $0x9c] sm:$0xf] %v199
    %260 = vst [vmem:[#allocation7 + $0xa0] sm:$0xf] %v200
    %261 = vst [vmem:[#allocation7 + $0xa4] sm:$0xf] %v201
    %262 = vst [vmem:[#allocation7 + $0xa8] sm:$0xf] %v202
    %263 = vst [vmem:[#allocation7 + $0xac] sm:$0xf] %v203
    %264 = vst [vmem:[#allocation7 + $0xb0] sm:$0xf] %v204
    %265 = vst [vmem:[#allocation7 + $0xb4] sm:$0xf] %v205
    %266 = vst [vmem:[#allocation7 + $0xb8] sm:$0xf] %v206
    %267 = vst [vmem:[#allocation7 + $0xbc] sm:$0xf] %v207
    %268 = vst [vmem:[#allocation7 + $0xc0] sm:$0xf] %v208
    %269 = vst [vmem:[#allocation7 + $0xc4] sm:$0xf] %v209
    %270 = vst [vmem:[#allocation7 + $0xc8] sm:$0xf] %v210
    %271 = vst [vmem:[#allocation7 + $0xcc] sm:$0xf] %v211
    %272 = vst [vmem:[#allocation7 + $0xd0] sm:$0xf] %v212
    %273 = vst [vmem:[#allocation7 + $0xd4] sm:$0xf] %v213
    %274 = vst [vmem:[#allocation7 + $0xd8] sm:$0xf] %v214
    %275 = vst [vmem:[#allocation7 + $0xdc] sm:$0xf] %v215
    %276 = vst [vmem:[#allocation7 + $0xe0] sm:$0xf] %v216
    %277 = vst [vmem:[#allocation7 + $0xe4] sm:$0xf] %v217
    %278 = vst [vmem:[#allocation7 + $0xe8] sm:$0xf] %v218
    %279 = vst [vmem:[#allocation7 + $0xec] sm:$0xf] %v219
    // Predicated region
    $region18: #{tpu_custom_call.1} parent=1 // pred_check
      _
    $region19: #{tpu_custom_call.1} parent=1 // pred_check_branch
      %281 = sbr.rel (0) target = $region21
    $region20: #{tpu_custom_call.1} parent=1 // pred_region
      %s283 = ssub.s32 3840, 3840
      %284 = vsyncadd [#allocation4], %s283
      %s285 = sshll.u32 [#allocation7], 4
      %s286 = int_to_ptr.vmem [resolvable:$true] %s285
      %291 = dma.vmem_to_hbm [thread:$0]  %s286, 3840, %s2, [#allocation4], 64, 64, 4
    $region21: #{tpu_custom_call.1} parent=1 // pred_fallthru
      _
    // Predicated region
    $region22: #{tpu_custom_call.1} parent=1 // pred_check
      _
    $region23: #{tpu_custom_call.1} parent=1 // pred_check_branch
      %293 = sbr.rel (0) target = $region25
    $region24: #{tpu_custom_call.1} parent=1 // pred_region
      %294 = dma.done [#allocation4], 3840
    $region25: #{tpu_custom_call.1} parent=1 // pred_fallthru
      _
    %295 = vsyncpa [#allocation3], 1
    %296 = vsyncpa [#allocation6], 1
    %297 = vsyncpa [#allocation4], 1

</llo_original>
